<compile_context>
chip_gen: v7x
topology: tpu7x:2x2x1
jax: 0.10.0
libtpu: 0.0.40
codegen_flags: <defaults>
</compile_context>

<pallas_src>
import jax
import jax.numpy as jnp
from jax.experimental import pallas as pl
from jax.experimental.pallas import tpu as pltpu


def _round_up(n, m):
    return ((n + m - 1) // m) * m


def actor_net_kernel(xt_ref, w_fc_ref, w_heads_ref, b_heads_ref, out_ref):
    xt = xt_ref[...]            # (4, TB)  f32, batch in lanes
    w = w_fc_ref[...]           # (100, 5) cols 0..3 = fc weight, col 4 = fc bias

    # fc + ReLU on the VPU: K=4 unrolled as broadcast multiply-adds; the fc
    # bias rides along as column 4 (no separate bias input stream).
    h = w[:, 0:1] * xt[0:1, :] + w[:, 4:5]                  # (100, TB)
    for k in range(1, 4):
        h = h + w[:, k:k + 1] * xt[k:k + 1, :]
    h = jnp.maximum(h, 0.0)

    # Fused mu/sigma heads: one (2,100) x (100,TB) MXU matmul whose result is
    # already in the lane-dense (head, batch) orientation.
    z = jnp.dot(w_heads_ref[...], h, preferred_element_type=jnp.float32)  # (2, TB)

    mu = 2.0 * jnp.tanh(z[0:1, :] + b_heads_ref[0])
    sg = z[1:2, :] + b_heads_ref[1]
    sg = jnp.logaddexp(jnp.zeros_like(sg), sg)              # stable softplus
    out_ref[0:1, :] = mu
    out_ref[1:2, :] = sg


def actor_net_forward(x, params, *, block_b=512):
    """x: (B, 4) float32. Returns (mu, sigma), each (B, 1) float32."""
    B = x.shape[0]
    # Batch tile: multiple of 128 lanes, at most block_b rows per grid step.
    TB = _round_up(min(block_b, _round_up(B, 128)), 128)
    B_pad = _round_up(B, TB)

    xt = jnp.transpose(x.astype(jnp.float32))               # (4, B)
    if B_pad != B:
        xt = jnp.pad(xt, ((0, 0), (0, B_pad - B)))

    out = pl.pallas_call(
        actor_net_kernel,
        out_shape=jax.ShapeDtypeStruct((2, B_pad), jnp.float32),
        grid=(B_pad // TB,),
        in_specs=[
            pl.BlockSpec((4, TB), lambda i: (0, i)),         # x^T, batch on lanes
            pl.BlockSpec((100, 5), lambda i: (0, 0)),        # fc weight (+bias col)
            pl.BlockSpec((2, 100), lambda i: (0, 0)),        # fused head weights
            pl.BlockSpec(memory_space=pltpu.MemorySpace.SMEM),  # fused head bias (2,)
        ],
        out_specs=pl.BlockSpec((2, TB), lambda i: (0, i)),
        compiler_params=pltpu.CompilerParams(
            dimension_semantics=("parallel",),               # shards over v7x's 2 TCs
        ),
    )(xt, params["w_fc_aug"], params["w_heads"], params["b_heads"])

    mu = out[0, :B].reshape(B, 1)
    sigma = out[1, :B].reshape(B, 1)
    return mu, sigma


def init_params(key):
    """Deterministic init matching the PyTorch module's shapes.

    Storage layout used by the kernel:
      w_fc_aug: (100, 5) = [fc.weight (100,4) | fc.bias (100,1)]
      w_heads:  (2, 100) = [mu_head.weight ; sigma_head.weight]
      b_heads:  (2,)     = [mu_head.bias, sigma_head.bias]
    """
    k1, k2, k3, k4, k5, k6 = jax.random.split(key, 6)

    def linear(kw, kb, fan_in, fan_out):
        bound = 1.0 / (fan_in ** 0.5)
        w = jax.random.uniform(kw, (fan_out, fan_in), jnp.float32, -bound, bound)
        b = jax.random.uniform(kb, (fan_out,), jnp.float32, -bound, bound)
        return w, b

    w_fc, b_fc = linear(k1, k2, 4, 100)
    w_mu, b_mu = linear(k3, k4, 100, 1)
    w_sg, b_sg = linear(k5, k6, 100, 1)

    return dict(
        w_fc_aug=jnp.concatenate([w_fc, b_fc[:, None]], axis=1),
        w_heads=jnp.concatenate([w_mu, w_sg], axis=0),
        b_heads=jnp.concatenate([b_mu, b_sg], axis=0),
    )


def reference_forward(x, p):
    w_fc = p["w_fc_aug"][:, :4]
    b_fc = p["w_fc_aug"][:, 4]
    h = jnp.maximum(x @ w_fc.T + b_fc, 0.0)
    z = h @ p["w_heads"].T + p["b_heads"]
    mu = 2.0 * jnp.tanh(z[:, 0:1])
    sigma = jnp.logaddexp(0.0, z[:, 1:2])
    return mu, sigma


if __name__ == "__main__":
    key = jax.random.PRNGKey(0)
    kx, kp = jax.random.split(key)

    B = 8                                    # small batch, consistent with Linear(4, ...)
    x = jax.random.normal(kx, (B, 4), jnp.float32)
    params = init_params(kp)

    mu, sigma = actor_net_forward(x, params)
    jax.block_until_ready((mu, sigma))

    mu_ref, sigma_ref = reference_forward(x, params)
    assert mu.shape == (B, 1) and sigma.shape == (B, 1)
    assert jnp.allclose(mu, mu_ref, atol=1e-5, rtol=1e-5)
    assert jnp.allclose(sigma, sigma_ref, atol=1e-5, rtol=1e-5)

    print("KERNEL_OK")
</pallas_src>

<mosaic_0001>
module attributes {stable_mosaic.version = 11 : i64} {
  func.func @actor_net_kernel(%arg0: i32, %arg1: memref<4x128xf32, #tpu.memory_space<vmem>>, %arg2: memref<100x5xf32, #tpu.memory_space<vmem>>, %arg3: memref<2x100xf32, #tpu.memory_space<vmem>>, %arg4: memref<2xf32, #tpu.memory_space<smem>>, %arg5: memref<2x128xf32, #tpu.memory_space<vmem>>) attributes {dimension_semantics = [#tpu.dimension_semantics<parallel>], iteration_bounds = array<i64: 1>, scalar_prefetch = 0 : i64, scratch_operands = 0 : i64, tpu.core_type = #tpu.core_type<tc>, window_params = [{transform_indices = @transform_0, window_bounds = array<i64: 4, 128>}, {pipeline_mode = #tpu.pipeline_mode<synchronous>, transform_indices = @transform_1, window_bounds = array<i64: 100, 5>}, {pipeline_mode = #tpu.pipeline_mode<synchronous>, transform_indices = @transform_2, window_bounds = array<i64: 2, 100>}, {transform_indices = @transform_3, window_bounds = array<i64: 2>}, {transform_indices = @transform_4, window_bounds = array<i64: 2, 128>}]} {
    %c0 = arith.constant 0 : index
    %c0_0 = arith.constant 0 : index
    %0 = vector.load %arg1[%c0, %c0_0] : memref<4x128xf32, #tpu.memory_space<vmem>>, vector<4x128xf32>
    %c0_1 = arith.constant 0 : index
    %c0_2 = arith.constant 0 : index
    %1 = vector.load %arg2[%c0_1, %c0_2] : memref<100x5xf32, #tpu.memory_space<vmem>>, vector<100x5xf32>
    %2 = vector.extract_strided_slice %1 {offsets = [0, 0], sizes = [100, 1], strides = [1, 1]} : vector<100x5xf32> to vector<100x1xf32>
    %3 = vector.extract_strided_slice %0 {offsets = [0, 0], sizes = [1, 128], strides = [1, 1]} : vector<4x128xf32> to vector<1x128xf32>
    %4 = vector.broadcast %2 : vector<100x1xf32> to vector<100x128xf32>
    %5 = vector.broadcast %3 : vector<1x128xf32> to vector<100x128xf32>
    %6 = arith.mulf %4, %5 : vector<100x128xf32>
    %7 = vector.extract_strided_slice %1 {offsets = [0, 4], sizes = [100, 1], strides = [1, 1]} : vector<100x5xf32> to vector<100x1xf32>
    %8 = vector.broadcast %7 : vector<100x1xf32> to vector<100x128xf32>
    %9 = arith.addf %6, %8 : vector<100x128xf32>
    %10 = vector.extract_strided_slice %1 {offsets = [0, 1], sizes = [100, 1], strides = [1, 1]} : vector<100x5xf32> to vector<100x1xf32>
    %11 = vector.extract_strided_slice %0 {offsets = [1, 0], sizes = [1, 128], strides = [1, 1]} : vector<4x128xf32> to vector<1x128xf32>
    %12 = vector.broadcast %10 : vector<100x1xf32> to vector<100x128xf32>
    %13 = vector.broadcast %11 : vector<1x128xf32> to vector<100x128xf32>
    %14 = arith.mulf %12, %13 : vector<100x128xf32>
    %15 = arith.addf %9, %14 : vector<100x128xf32>
    %16 = vector.extract_strided_slice %1 {offsets = [0, 2], sizes = [100, 1], strides = [1, 1]} : vector<100x5xf32> to vector<100x1xf32>
    %17 = vector.extract_strided_slice %0 {offsets = [2, 0], sizes = [1, 128], strides = [1, 1]} : vector<4x128xf32> to vector<1x128xf32>
    %18 = vector.broadcast %16 : vector<100x1xf32> to vector<100x128xf32>
    %19 = vector.broadcast %17 : vector<1x128xf32> to vector<100x128xf32>
    %20 = arith.mulf %18, %19 : vector<100x128xf32>
    %21 = arith.addf %15, %20 : vector<100x128xf32>
    %22 = vector.extract_strided_slice %1 {offsets = [0, 3], sizes = [100, 1], strides = [1, 1]} : vector<100x5xf32> to vector<100x1xf32>
    %23 = vector.extract_strided_slice %0 {offsets = [3, 0], sizes = [1, 128], strides = [1, 1]} : vector<4x128xf32> to vector<1x128xf32>
    %24 = vector.broadcast %22 : vector<100x1xf32> to vector<100x128xf32>
    %25 = vector.broadcast %23 : vector<1x128xf32> to vector<100x128xf32>
    %26 = arith.mulf %24, %25 : vector<100x128xf32>
    %27 = arith.addf %21, %26 : vector<100x128xf32>
    %cst = arith.constant 0.000000e+00 : f32
    %28 = vector.broadcast %cst : f32 to vector<100x128xf32>
    %29 = arith.maximumf %27, %28 : vector<100x128xf32>
    %c0_3 = arith.constant 0 : index
    %c0_4 = arith.constant 0 : index
    %30 = vector.load %arg3[%c0_3, %c0_4] : memref<2x100xf32, #tpu.memory_space<vmem>>, vector<2x100xf32>
    %cst_5 = arith.constant dense<0.000000e+00> : vector<2x128xf32>
    %31 = tpu.matmul %30, %29, %cst_5 {dimension_numbers = #tpu.dot_dimension_numbers<[1], [0], [0], [1], [0, 0, 1, 1], [], []>} : vector<2x100xf32>, vector<100x128xf32>, vector<2x128xf32> -> vector<2x128xf32>
    %32 = vector.extract_strided_slice %31 {offsets = [0, 0], sizes = [1, 128], strides = [1, 1]} : vector<2x128xf32> to vector<1x128xf32>
    %c0_6 = arith.constant 0 : index
    %33 = memref.load %arg4[%c0_6] : memref<2xf32, #tpu.memory_space<smem>>
    %34 = vector.broadcast %33 : f32 to vector<1x128xf32>
    %35 = arith.addf %32, %34 : vector<1x128xf32>
    %36 = math.tanh %35 : vector<1x128xf32>
    %cst_7 = arith.constant 2.000000e+00 : f32
    %37 = vector.broadcast %cst_7 : f32 to vector<1x128xf32>
    %38 = arith.mulf %37, %36 : vector<1x128xf32>
    %39 = vector.extract_strided_slice %31 {offsets = [1, 0], sizes = [1, 128], strides = [1, 1]} : vector<2x128xf32> to vector<1x128xf32>
    %c1 = arith.constant 1 : index
    %40 = memref.load %arg4[%c1] : memref<2xf32, #tpu.memory_space<smem>>
    %41 = vector.broadcast %40 : f32 to vector<1x128xf32>
    %42 = arith.addf %39, %41 : vector<1x128xf32>
    %cst_8 = arith.constant 0.000000e+00 : f32
    %43 = vector.broadcast %cst_8 : f32 to vector<1x128xf32>
    %44 = arith.maximumf %43, %42 : vector<1x128xf32>
    %45 = arith.subf %43, %42 : vector<1x128xf32>
    %46 = arith.cmpf one, %45, %45 : vector<1x128xf32>
    %47 = arith.addf %43, %42 : vector<1x128xf32>
    %48 = math.absf %45 : vector<1x128xf32>
    %cst_9 = arith.constant 0.000000e+00 : f32
    %49 = vector.broadcast %cst_9 : f32 to vector<1x128xf32>
    %50 = arith.subf %49, %48 : vector<1x128xf32>
    %51 = math.exp %50 : vector<1x128xf32>
    %52 = math.log1p %51 : vector<1x128xf32>
    %53 = arith.addf %44, %52 : vector<1x128xf32>
    %54 = arith.select %46, %47, %53 : vector<1x128xi1>, vector<1x128xf32>
    %c0_10 = arith.constant 0 : index
    %c0_11 = arith.constant 0 : index
    %55 = vector.load %arg5[%c0_10, %c0_11] : memref<2x128xf32, #tpu.memory_space<vmem>>, vector<1x128xf32>
    tpu.vector_store %arg5[%c0_10, %c0_11], %38 {strides = array<i32>} : memref<2x128xf32, #tpu.memory_space<vmem>>, vector<1x128xf32>,
    %c1_12 = arith.constant 1 : index
    %c0_13 = arith.constant 0 : index
    %56 = vector.load %arg5[%c1_12, %c0_13] : memref<2x128xf32, #tpu.memory_space<vmem>>, vector<1x128xf32>
    tpu.vector_store %arg5[%c1_12, %c0_13], %54 {strides = array<i32>} : memref<2x128xf32, #tpu.memory_space<vmem>>, vector<1x128xf32>,
    return
  }
  func.func @transform_0(%arg0: i32) -> (i32, i32) {
    %c0_i32 = arith.constant 0 : i32
    %c0_i32_0 = arith.constant 0 : i32
    return %c0_i32, %arg0 : i32, i32
  }
  func.func @transform_1(%arg0: i32) -> (i32, i32) {
    %c0_i32 = arith.constant 0 : i32
    %c0_i32_0 = arith.constant 0 : i32
    %c0_i32_1 = arith.constant 0 : i32
    return %c0_i32, %c0_i32_0 : i32, i32
  }
  func.func @transform_2(%arg0: i32) -> (i32, i32) {
    %c0_i32 = arith.constant 0 : i32
    %c0_i32_0 = arith.constant 0 : i32
    %c0_i32_1 = arith.constant 0 : i32
    return %c0_i32, %c0_i32_0 : i32, i32
  }
  func.func @transform_3(%arg0: i32) -> i32 {
    %c0_i32 = arith.constant 0 : i32
    %c0_i32_0 = arith.constant 0 : i32
    return %c0_i32 : i32
  }
  func.func @transform_4(%arg0: i32) -> (i32, i32) {
    %c0_i32 = arith.constant 0 : i32
    %c0_i32_0 = arith.constant 0 : i32
    return %c0_i32, %arg0 : i32, i32
  }
}

</mosaic_0001>

<llo_original>
// kernel: tpu_custom_call.1
$region0: #{tpu_custom_call.1}
  #allocation0 [shape = 'u32[]', space=smem, size = 0x4, offset = 0x4, fixed_abs, tag = 'smem constant byte address 0x4 - core index']
  #allocation1 [shape = 'u32[144,128]{1,0:T(1,128)}', space=vmem, size = 0x12000, scoped, tag = 'internal scratch']
  %s0 = inlined_call_operand.vmem [shape: f32[4,128], index: 0, kind: input, shape index: {}]
  %s1 = inlined_call_operand.vmem [shape: f32[100,5], index: 1, kind: input, shape index: {}]
  %s2 = inlined_call_operand.vmem [shape: f32[2,100], index: 2, kind: input, shape index: {}]
  %s3 = inlined_call_operand.vmem [shape: f32[2], index: 3, kind: input, shape index: {}]
  %s4 = inlined_call_operand.hbm [shape: f32[2,128], index: 4, kind: output, shape index: {}]
  %s5 = sld [smem:[#allocation0]]
  $region30: #{tpu_custom_call.1} parent=0
    _
  %s7 = ssub.s32 1, %s5
  %s8 = scalar_select 0, %s7, %s5
  $region1: #{tpu_custom_call.1} parent=0
    #allocation2 [shape = 'u8[512]{0}', space=smem, size = 0x200, scoped, tag = 'input window, operand 3, single buffered']
    #allocation3 [shape = 's32[1]{0}', space=sflag, size = 0x4, scoped, tag = 'scoped memory for tpu_custom_call.1']
    #allocation4 [shape = 's32[1]{0}', space=sflag, size = 0x4, scoped, tag = 'scoped memory for tpu_custom_call.1']
    #allocation5 [shape = 'u8[1024]{0}', space=vmem, size = 0x400, scoped, tag = 'output window, operand 0, single buffered']
    %9 = vsyncpa [#allocation4], 0
    %10 = vsyncpa [#allocation3], 0
    // Predicated region
    $region2: #{tpu_custom_call.1} parent=1 // pred_check
      _
    $region3: #{tpu_custom_call.1} parent=1 // pred_check_branch
      %12 = sbr.rel (0) target = $region5
    $region4: #{tpu_custom_call.1} parent=1 // pred_region
      _
    $region5: #{tpu_custom_call.1} parent=1 // pred_fallthru
      _
    // Predicated region
    $region6: #{tpu_custom_call.1} parent=1 // pred_check
      _
    $region7: #{tpu_custom_call.1} parent=1 // pred_check_branch
      %14 = sbr.rel (0) target = $region9
    $region8: #{tpu_custom_call.1} parent=1 // pred_region
      _
    $region9: #{tpu_custom_call.1} parent=1 // pred_fallthru
      _
    // Predicated region
    $region10: #{tpu_custom_call.1} parent=1 // pred_check
      _
    $region11: #{tpu_custom_call.1} parent=1 // pred_check_branch
      %16 = sbr.rel (0) target = $region13
    $region12: #{tpu_custom_call.1} parent=1 // pred_region
      _
    $region13: #{tpu_custom_call.1} parent=1 // pred_fallthru
      _
    // Predicated region
    $region14: #{tpu_custom_call.1} parent=1 // pred_check
      _
    $region15: #{tpu_custom_call.1} parent=1 // pred_check_branch
      %18 = sbr.rel (0) target = $region17
    $region16: #{tpu_custom_call.1} parent=1 // pred_region
      %s20 = ssub.s32 16, 16
      %21 = vsyncadd [#allocation4], %s20
      %s23 = sshll.u32 %s3, 4
      %s24 = int_to_ptr.vmem [resolvable:$true] %s23
      %26 = dma.vmem_to_smem %s24, 16, [#allocation2], [#allocation4]
    $region17: #{tpu_custom_call.1} parent=1 // pred_fallthru
      _
    // Predicated region
    $region18: #{tpu_custom_call.1} parent=1 // pred_check
      _
    $region19: #{tpu_custom_call.1} parent=1 // pred_check_branch
      %28 = sbr.rel (0) target = $region21
    $region20: #{tpu_custom_call.1} parent=1 // pred_region
      %29 = dma.done [#allocation4], 16
    $region21: #{tpu_custom_call.1} parent=1 // pred_fallthru
      _
    %30 = sfence
    %v31 = vld [vmem:[%s0] sm:$0xf]
    %v32 = vld [vmem:[%s1] sm:$0xff]
    %v33 = vld [vmem:[%s1 + $0x8] sm:$0xff]
    %v34 = vld [vmem:[%s1 + $0x10] sm:$0xff]
    %v35 = vld [vmem:[%s1 + $0x18] sm:$0xff]
    %v36 = vld [vmem:[%s1 + $0x20] sm:$0xff]
    %v37 = vld [vmem:[%s1 + $0x28] sm:$0xff]
    %v38 = vld [vmem:[%s1 + $0x30] sm:$0xff]
    %v39 = vld [vmem:[%s1 + $0x38] sm:$0xff]
    %v40 = vld [vmem:[%s1 + $0x40] sm:$0xff]
    %v41 = vld [vmem:[%s1 + $0x48] sm:$0xff]
    %v42 = vld [vmem:[%s1 + $0x50] sm:$0xff]
    %v43 = vld [vmem:[%s1 + $0x58] sm:$0xff]
    %v44 = vld [vmem:[%s1 + $0x60] sm:$0xf]
    %46 = vset.pattern.permute.xlu0 0
    %47 = vperm.xlu0 %46, %v32
    %v48 = vpop.permute.xlu0 %47
    %51 = vset.pattern.permute.xlu0 0
    %52 = vperm.xlu0 %51, %v33
    %v53 = vpop.permute.xlu0 %52
    %56 = vset.pattern.permute.xlu0 0
    %57 = vperm.xlu0 %56, %v34
    %v58 = vpop.permute.xlu0 %57
    %61 = vset.pattern.permute.xlu0 0
    %62 = vperm.xlu0 %61, %v35
    %v63 = vpop.permute.xlu0 %62
    %66 = vset.pattern.permute.xlu0 0
    %67 = vperm.xlu0 %66, %v36
    %v68 = vpop.permute.xlu0 %67
    %71 = vset.pattern.permute.xlu0 0
    %72 = vperm.xlu0 %71, %v37
    %v73 = vpop.permute.xlu0 %72
    %76 = vset.pattern.permute.xlu0 0
    %77 = vperm.xlu0 %76, %v38
    %v78 = vpop.permute.xlu0 %77
    %81 = vset.pattern.permute.xlu0 0
    %82 = vperm.xlu0 %81, %v39
    %v83 = vpop.permute.xlu0 %82
    %86 = vset.pattern.permute.xlu0 0
    %87 = vperm.xlu0 %86, %v40
    %v88 = vpop.permute.xlu0 %87
    %91 = vset.pattern.permute.xlu0 0
    %92 = vperm.xlu0 %91, %v41
    %v93 = vpop.permute.xlu0 %92
    %96 = vset.pattern.permute.xlu0 0
    %97 = vperm.xlu0 %96, %v42
    %v98 = vpop.permute.xlu0 %97
    %101 = vset.pattern.permute.xlu0 0
    %102 = vperm.xlu0 %101, %v43
    %v103 = vpop.permute.xlu0 %102
    %106 = vset.pattern.permute.xlu0 0
    %107 = vperm.xlu0 %106, %v44
    %v108 = vpop.permute.xlu0 %107
    %v110 = vlaneseq
    %v111 = vshrl.u32 %v110, 7
    %v112 = vsub.s32 0, %v111
    %v113 = vrot.slane %v31, %v112
    %v114 = vmul.f32 %v48, %v113
    %v115 = vmul.f32 %v53, %v113
    %v116 = vmul.f32 %v58, %v113
    %v117 = vmul.f32 %v63, %v113
    %v118 = vmul.f32 %v68, %v113
    %v119 = vmul.f32 %v73, %v113
    %v120 = vmul.f32 %v78, %v113
    %v121 = vmul.f32 %v83, %v113
    %v122 = vmul.f32 %v88, %v113
    %v123 = vmul.f32 %v93, %v113
    %v124 = vmul.f32 %v98, %v113
    %v125 = vmul.f32 %v103, %v113
    %v126 = vmul.f32 %v108, %v113
    %127 = vset.pattern.permute.xlu0 4
    %128 = vperm.xlu0 %127, %v32
    %v129 = vpop.permute.xlu0 %128
    %131 = vset.pattern.permute.xlu0 4
    %132 = vperm.xlu0 %131, %v33
    %v133 = vpop.permute.xlu0 %132
    %135 = vset.pattern.permute.xlu0 4
    %136 = vperm.xlu0 %135, %v34
    %v137 = vpop.permute.xlu0 %136
    %139 = vset.pattern.permute.xlu0 4
    %140 = vperm.xlu0 %139, %v35
    %v141 = vpop.permute.xlu0 %140
    %143 = vset.pattern.permute.xlu0 4
    %144 = vperm.xlu0 %143, %v36
    %v145 = vpop.permute.xlu0 %144
    %147 = vset.pattern.permute.xlu0 4
    %148 = vperm.xlu0 %147, %v37
    %v149 = vpop.permute.xlu0 %148
    %151 = vset.pattern.permute.xlu0 4
    %152 = vperm.xlu0 %151, %v38
    %v153 = vpop.permute.xlu0 %152
    %155 = vset.pattern.permute.xlu0 4
    %156 = vperm.xlu0 %155, %v39
    %v157 = vpop.permute.xlu0 %156
    %159 = vset.pattern.permute.xlu0 4
    %160 = vperm.xlu0 %159, %v40
    %v161 = vpop.permute.xlu0 %160
    %163 = vset.pattern.permute.xlu0 4
    %164 = vperm.xlu0 %163, %v41
    %v165 = vpop.permute.xlu0 %164
    %167 = vset.pattern.permute.xlu0 4
    %168 = vperm.xlu0 %167, %v42
    %v169 = vpop.permute.xlu0 %168
    %171 = vset.pattern.permute.xlu0 4
    %172 = vperm.xlu0 %171, %v43
    %v173 = vpop.permute.xlu0 %172
    %175 = vset.pattern.permute.xlu0 4
    %176 = vperm.xlu0 %175, %v44
    %v177 = vpop.permute.xlu0 %176
    %v179 = vadd.f32 %v114, %v129
    %v180 = vadd.f32 %v115, %v133
    %v181 = vadd.f32 %v116, %v137
    %v182 = vadd.f32 %v117, %v141
    %v183 = vadd.f32 %v118, %v145
    %v184 = vadd.f32 %v119, %v149
    %v185 = vadd.f32 %v120, %v153
    %v186 = vadd.f32 %v121, %v157
    %v187 = vadd.f32 %v122, %v161
    %v188 = vadd.f32 %v123, %v165
    %v189 = vadd.f32 %v124, %v169
    %v190 = vadd.f32 %v125, %v173
    %v191 = vadd.f32 %v126, %v177
    %192 = vset.pattern.permute.xlu0 1
    %193 = vperm.xlu0 %192, %v32
    %v194 = vpop.permute.xlu0 %193
    %196 = vset.pattern.permute.xlu0 1
    %197 = vperm.xlu0 %196, %v33
    %v198 = vpop.permute.xlu0 %197
    %200 = vset.pattern.permute.xlu0 1
    %201 = vperm.xlu0 %200, %v34
    %v202 = vpop.permute.xlu0 %201
    %204 = vset.pattern.permute.xlu0 1
    %205 = vperm.xlu0 %204, %v35
    %v206 = vpop.permute.xlu0 %205
    %208 = vset.pattern.permute.xlu0 1
    %209 = vperm.xlu0 %208, %v36
    %v210 = vpop.permute.xlu0 %209
    %212 = vset.pattern.permute.xlu0 1
    %213 = vperm.xlu0 %212, %v37
    %v214 = vpop.permute.xlu0 %213
    %216 = vset.pattern.permute.xlu0 1
    %217 = vperm.xlu0 %216, %v38
    %v218 = vpop.permute.xlu0 %217
    %220 = vset.pattern.permute.xlu0 1
    %221 = vperm.xlu0 %220, %v39
    %v222 = vpop.permute.xlu0 %221
    %224 = vset.pattern.permute.xlu0 1
    %225 = vperm.xlu0 %224, %v40
    %v226 = vpop.permute.xlu0 %225
    %228 = vset.pattern.permute.xlu0 1
    %229 = vperm.xlu0 %228, %v41
    %v230 = vpop.permute.xlu0 %229
    %232 = vset.pattern.permute.xlu0 1
    %233 = vperm.xlu0 %232, %v42
    %v234 = vpop.permute.xlu0 %233
    %236 = vset.pattern.permute.xlu0 1
    %237 = vperm.xlu0 %236, %v43
    %v238 = vpop.permute.xlu0 %237
    %240 = vset.pattern.permute.xlu0 1
    %241 = vperm.xlu0 %240, %v44
    %v242 = vpop.permute.xlu0 %241
    %v244 = vlaneseq
    %v245 = vshrl.u32 %v244, 7
    %v246 = vsub.s32 1, %v245
    %v247 = vrot.slane %v31, %v246
    %v248 = vmul.f32 %v194, %v247
    %v249 = vmul.f32 %v198, %v247
    %v250 = vmul.f32 %v202, %v247
    %v251 = vmul.f32 %v206, %v247
    %v252 = vmul.f32 %v210, %v247
    %v253 = vmul.f32 %v214, %v247
    %v254 = vmul.f32 %v218, %v247
    %v255 = vmul.f32 %v222, %v247
    %v256 = vmul.f32 %v226, %v247
    %v257 = vmul.f32 %v230, %v247
    %v258 = vmul.f32 %v234, %v247
    %v259 = vmul.f32 %v238, %v247
    %v260 = vmul.f32 %v242, %v247
    %v261 = vadd.f32 %v179, %v248
    %v262 = vadd.f32 %v180, %v249
    %v263 = vadd.f32 %v181, %v250
    %v264 = vadd.f32 %v182, %v251
    %v265 = vadd.f32 %v183, %v252
    %v266 = vadd.f32 %v184, %v253
    %v267 = vadd.f32 %v185, %v254
    %v268 = vadd.f32 %v186, %v255
    %v269 = vadd.f32 %v187, %v256
    %v270 = vadd.f32 %v188, %v257
    %v271 = vadd.f32 %v189, %v258
    %v272 = vadd.f32 %v190, %v259
    %v273 = vadd.f32 %v191, %v260
    %274 = vset.pattern.permute.xlu0 2
    %275 = vperm.xlu0 %274, %v32
    %v276 = vpop.permute.xlu0 %275
    %278 = vset.pattern.permute.xlu0 2
    %279 = vperm.xlu0 %278, %v33
    %v280 = vpop.permute.xlu0 %279
    %282 = vset.pattern.permute.xlu0 2
    %283 = vperm.xlu0 %282, %v34
    %v284 = vpop.permute.xlu0 %283
    %286 = vset.pattern.permute.xlu0 2
    %287 = vperm.xlu0 %286, %v35
    %v288 = vpop.permute.xlu0 %287
    %290 = vset.pattern.permute.xlu0 2
    %291 = vperm.xlu0 %290, %v36
    %v292 = vpop.permute.xlu0 %291
    %294 = vset.pattern.permute.xlu0 2
    %295 = vperm.xlu0 %294, %v37
    %v296 = vpop.permute.xlu0 %295
    %298 = vset.pattern.permute.xlu0 2
    %299 = vperm.xlu0 %298, %v38
    %v300 = vpop.permute.xlu0 %299
    %302 = vset.pattern.permute.xlu0 2
    %303 = vperm.xlu0 %302, %v39
    %v304 = vpop.permute.xlu0 %303
    %306 = vset.pattern.permute.xlu0 2
    %307 = vperm.xlu0 %306, %v40
    %v308 = vpop.permute.xlu0 %307
    %310 = vset.pattern.permute.xlu0 2
    %311 = vperm.xlu0 %310, %v41
    %v312 = vpop.permute.xlu0 %311
    %314 = vset.pattern.permute.xlu0 2
    %315 = vperm.xlu0 %314, %v42
    %v316 = vpop.permute.xlu0 %315
    %318 = vset.pattern.permute.xlu0 2
    %319 = vperm.xlu0 %318, %v43
    %v320 = vpop.permute.xlu0 %319
    %322 = vset.pattern.permute.xlu0 2
    %323 = vperm.xlu0 %322, %v44
    %v324 = vpop.permute.xlu0 %323
    %v326 = vlaneseq
    %v327 = vshrl.u32 %v326, 7
    %v328 = vsub.s32 2, %v327
    %v329 = vrot.slane %v31, %v328
    %v330 = vmul.f32 %v276, %v329
    %v331 = vmul.f32 %v280, %v329
    %v332 = vmul.f32 %v284, %v329
    %v333 = vmul.f32 %v288, %v329
    %v334 = vmul.f32 %v292, %v329
    %v335 = vmul.f32 %v296, %v329
    %v336 = vmul.f32 %v300, %v329
    %v337 = vmul.f32 %v304, %v329
    %v338 = vmul.f32 %v308, %v329
    %v339 = vmul.f32 %v312, %v329
    %v340 = vmul.f32 %v316, %v329
    %v341 = vmul.f32 %v320, %v329
    %v342 = vmul.f32 %v324, %v329
    %v343 = vadd.f32 %v261, %v330
    %v344 = vadd.f32 %v262, %v331
    %v345 = vadd.f32 %v263, %v332
    %v346 = vadd.f32 %v264, %v333
    %v347 = vadd.f32 %v265, %v334
    %v348 = vadd.f32 %v266, %v335
    %v349 = vadd.f32 %v267, %v336
    %v350 = vadd.f32 %v268, %v337
    %v351 = vadd.f32 %v269, %v338
    %v352 = vadd.f32 %v270, %v339
    %v353 = vadd.f32 %v271, %v340
    %v354 = vadd.f32 %v272, %v341
    %v355 = vadd.f32 %v273, %v342
    %356 = vset.pattern.permute.xlu0 3
    %357 = vperm.xlu0 %356, %v32
    %v358 = vpop.permute.xlu0 %357
    %360 = vset.pattern.permute.xlu0 3
    %361 = vperm.xlu0 %360, %v33
    %v362 = vpop.permute.xlu0 %361
    %364 = vset.pattern.permute.xlu0 3
    %365 = vperm.xlu0 %364, %v34
    %v366 = vpop.permute.xlu0 %365
    %368 = vset.pattern.permute.xlu0 3
    %369 = vperm.xlu0 %368, %v35
    %v370 = vpop.permute.xlu0 %369
    %372 = vset.pattern.permute.xlu0 3
    %373 = vperm.xlu0 %372, %v36
    %v374 = vpop.permute.xlu0 %373
    %376 = vset.pattern.permute.xlu0 3
    %377 = vperm.xlu0 %376, %v37
    %v378 = vpop.permute.xlu0 %377
    %380 = vset.pattern.permute.xlu0 3
    %381 = vperm.xlu0 %380, %v38
    %v382 = vpop.permute.xlu0 %381
    %384 = vset.pattern.permute.xlu0 3
    %385 = vperm.xlu0 %384, %v39
    %v386 = vpop.permute.xlu0 %385
    %388 = vset.pattern.permute.xlu0 3
    %389 = vperm.xlu0 %388, %v40
    %v390 = vpop.permute.xlu0 %389
    %392 = vset.pattern.permute.xlu0 3
    %393 = vperm.xlu0 %392, %v41
    %v394 = vpop.permute.xlu0 %393
    %396 = vset.pattern.permute.xlu0 3
    %397 = vperm.xlu0 %396, %v42
    %v398 = vpop.permute.xlu0 %397
    %400 = vset.pattern.permute.xlu0 3
    %401 = vperm.xlu0 %400, %v43
    %v402 = vpop.permute.xlu0 %401
    %404 = vset.pattern.permute.xlu0 3
    %405 = vperm.xlu0 %404, %v44
    %v406 = vpop.permute.xlu0 %405
    %v408 = vlaneseq
    %v409 = vshrl.u32 %v408, 7
    %v410 = vsub.s32 3, %v409
    %v411 = vrot.slane %v31, %v410
    %v412 = vmul.f32 %v358, %v411
    %v413 = vmul.f32 %v362, %v411
    %v414 = vmul.f32 %v366, %v411
    %v415 = vmul.f32 %v370, %v411
    %v416 = vmul.f32 %v374, %v411
    %v417 = vmul.f32 %v378, %v411
    %v418 = vmul.f32 %v382, %v411
    %v419 = vmul.f32 %v386, %v411
    %v420 = vmul.f32 %v390, %v411
    %v421 = vmul.f32 %v394, %v411
    %v422 = vmul.f32 %v398, %v411
    %v423 = vmul.f32 %v402, %v411
    %v424 = vmul.f32 %v406, %v411
    %v425 = vadd.f32 %v343, %v412
    %v426 = vadd.f32 %v344, %v413
    %v427 = vadd.f32 %v345, %v414
    %v428 = vadd.f32 %v346, %v415
    %v429 = vadd.f32 %v347, %v416
    %v430 = vadd.f32 %v348, %v417
    %v431 = vadd.f32 %v349, %v418
    %v432 = vadd.f32 %v350, %v419
    %v433 = vadd.f32 %v351, %v420
    %v434 = vadd.f32 %v352, %v421
    %v435 = vadd.f32 %v353, %v422
    %v436 = vadd.f32 %v354, %v423
    %v437 = vadd.f32 %v355, %v424
    %v438 = vmax.f32 %v425, 0.0
    %v439 = vmax.f32 %v426, 0.0
    %v440 = vmax.f32 %v427, 0.0
    %v441 = vmax.f32 %v428, 0.0
    %v442 = vmax.f32 %v429, 0.0
    %v443 = vmax.f32 %v430, 0.0
    %v444 = vmax.f32 %v431, 0.0
    %v445 = vmax.f32 %v432, 0.0
    %v446 = vmax.f32 %v433, 0.0
    %v447 = vmax.f32 %v434, 0.0
    %v448 = vmax.f32 %v435, 0.0
    %v449 = vmax.f32 %v436, 0.0
    %v450 = vmax.f32 %v437, 0.0
    %v451 = vld [vmem:[%s2] sm:$0x3]
    %vm452 = vcmask 818176
    %v454 = vsel %vm452, %v451, 0
    %vm456 = vcmask 1043456
    %v458 = vsel %vm456, %v450, 0
    %460 = vmatprep.subr.mxu0 0.0
    %461 = vmatpush1.msra.mxu0 %v438
    %462 = vmatprep.subr.mxu0 0.0
    %463 = vmatpush1.msra.mxu0 %v439
    %464 = vmatprep.subr.mxu0 0.0
    %465 = vmatpush1.msra.mxu0 %v440
    %466 = vmatprep.subr.mxu0 0.0
    %467 = vmatpush1.msra.mxu0 %v441
    %468 = vmatprep.subr.mxu0 0.0
    %469 = vmatpush1.msra.mxu0 %v442
    %470 = vmatprep.subr.mxu0 0.0
    %471 = vmatpush1.msra.mxu0 %v443
    %472 = vmatprep.subr.mxu0 0.0
    %473 = vmatpush1.msra.mxu0 %v444
    %474 = vmatprep.subr.mxu0 0.0
    %475 = vmatpush1.msra.mxu0 %v445
    %476 = vmatprep.subr.mxu0 0.0
    %477 = vmatpush1.msra.mxu0 %v446
    %478 = vmatprep.subr.mxu0 0.0
    %479 = vmatpush1.msra.mxu0 %v447
    %480 = vmatprep.subr.mxu0 0.0
    %481 = vmatpush1.msra.mxu0 %v448
    %482 = vmatprep.subr.mxu0 0.0
    %483 = vmatpush1.msra.mxu0 %v449
    %484 = vmatprep.subr.mxu0 0.0
    %485 = vmatpush1.msra.mxu0 %v458
    %486 = vmatprep.subr.mxu0 0.0
    %487 = vmatpush1.msra.mxu0 0.0
    %488 = vmatprep.subr.mxu0 0.0
    %489 = vmatpush1.msra.mxu0 0.0
    %490 = vmatprep.subr.mxu0 0.0
    %491 = vmatpush1.msra.mxu0 0.0
    %492 = vmatprep.subr.mxu0 0.0
    %493 = vmatpush1.msra.mxu0 0.0
    %494 = vmatprep.subr.mxu0 0.0
    %495 = vmatpush1.msra.mxu0 0.0
    %496 = vmatprep.subr.mxu0 0.0
    %497 = vmatpush1.msra.mxu0 0.0
    %498 = vmatprep.subr.mxu0 0.0
    %499 = vmatpush1.msra.mxu0 0.0
    %500 = vmatprep.subr.mxu0 0.0
    %501 = vmatpush1.msra.mxu0 0.0
    %502 = vmatprep.subr.mxu0 0.0
    %503 = vmatpush1.msra.mxu0 0.0
    %504 = vmatprep.subr.mxu0 0.0
    %505 = vmatpush1.msra.mxu0 0.0
    %506 = vmatprep.subr.mxu0 0.0
    %507 = vmatpush1.msra.mxu0 0.0
    %508 = vmatprep.subr.mxu0 0.0
    %509 = vmatpush1.msra.mxu0 0.0
    %510 = vmatprep.subr.mxu0 0.0
    %511 = vmatpush1.msra.mxu0 0.0
    %512 = vmatprep.subr.mxu0 0.0
    %513 = vmatpush1.msra.mxu0 0.0
    %514 = vmatprep.subr.mxu0 0.0
    %515 = vmatpush1.msra.mxu0 0.0
    %516 = vmatprep.subr.mxu0 0.0
    %517 = vmatpush1.msra.mxu0 0.0
    %518 = vmatprep.subr.mxu0 0.0
    %519 = vmatpush1.msra.mxu0 0.0
    %520 = vmatprep.subr.mxu0 0.0
    %521 = vmatpush1.msra.mxu0 0.0
    %522 = vmatprep.subr.mxu0 0.0
    %523 = vmatpush1.msra.mxu0 0.0
    %524 = vmatprep.mubr.f32.mxu0 0.0
    %525 = vmatmul.mubr.f32.gmra.mrb[0].mxu0 %v454
    %v526 = vpop.f32.mrb[0].mxu0
    %v527 = vadd.f32 0.0, %v526
    %v528 = vpop.f32.mrb[0].mxu0
    %529 = vdwg.mxu0
    %s530 = sld [smem:[#allocation2]]
    %v531 = vstv %s530
    %v532 = vadd.f32 %v527, %v531
    %v533 = vtanh.pop %v532
    %v534 = vmul.f32 %v533, 2.0
    %s535 = sld [smem:[#allocation2 + $0x1]]
    %v536 = vstv %s535
    %v537 = vadd.f32 %v527, %v536
    %v538 = vmax.f32 %v537, 0.0
    %v539 = vsub.f32 0.0, %v537
    %vm540 = vcmp.ne.f32.partialorder %v539, %v539
    %v541 = vadd.f32 %v537, 0.0
    %v542 = vand.u32 2147483647, %v539
    %v543 = vsub.f32 0.0, %v542
    %v544 = vmul.f32 %v543, 1.442695
    %v545 = vpow.pop %v544
    %v546 = vadd.f32 %v545, 1.0
    %v547 = vlog2.pop %v546
    %v548 = vmul.f32 %v547, 0.6931472
    %v549 = vmul.f32 -0.5, %v545
    %v550 = vadd.f32 %v549, 1.0
    %v551 = vmul.f32 %v550, %v545
    %v552 = vand.u32 2147483647, %v545
    %vm553 = vcmp.lt.f32.partialorder %v552, 0.0004427343
    %v554 = vsel %vm553, %v551, %v548
    %v555 = vadd.f32 %v538, %v554
    %v556 = vsel %vm540, %v541, %v555
    %557 = vst [vmem:[#allocation5] sm:$0x1] %v534
    %558 = vst [vmem:[#allocation5] sm:$0x2] %v556
    // Predicated region
    $region22: #{tpu_custom_call.1} parent=1 // pred_check
      _
    $region23: #{tpu_custom_call.1} parent=1 // pred_check_branch
      %560 = sbr.rel (0) target = $region25
    $region24: #{tpu_custom_call.1} parent=1 // pred_region
      %s562 = ssub.s32 32, 32
      %563 = vsyncadd [#allocation3], %s562
      %s565 = sshll.u32 [#allocation5], 4
      %s566 = int_to_ptr.vmem [resolvable:$true] %s565
      %568 = dma.vmem_to_hbm [thread:$0]  %s566, 32, %s4, [#allocation3]
    $region25: #{tpu_custom_call.1} parent=1 // pred_fallthru
      _
    // Predicated region
    $region26: #{tpu_custom_call.1} parent=1 // pred_check
      _
    $region27: #{tpu_custom_call.1} parent=1 // pred_check_branch
      %570 = sbr.rel (0) target = $region29
    $region28: #{tpu_custom_call.1} parent=1 // pred_region
      %571 = dma.done [#allocation3], 32
    $region29: #{tpu_custom_call.1} parent=1 // pred_fallthru
      _
    %572 = vsyncpa [#allocation3], 1
    %573 = vsyncpa [#allocation4], 1

</llo_original>
